<compile_context>
chip_gen: v7x
topology: tpu7x:2x2x1
jax: 0.10.0
libtpu: 0.0.40
codegen_flags: <defaults>
</compile_context>

<pallas_src>
import functools
import math

import jax
import jax.numpy as jnp
from jax import lax
from jax.experimental import pallas as pl
from jax.experimental.pallas import tpu as pltpu

NDF = 4                 # conv in-channels = ndf * 8 = 32
KH = KW = 4
SH = SW = 2

# TODO(synk): bcondition=True path uses Block3x3_leakRelu (jointConv), which is
# not defined in the provided source; only the unconditional branch is implemented.


def _cdiv(a, b):
    return (a + b - 1) // b


def _conv_sigmoid_kernel(x_ref, w_ref, b_ref, o_ref, *, ho, wo):
    # x_ref: (TB, Hh, Wh, CS) bf16  space-to-depth, channel-last activations
    # w_ref: (4, CS)          f32   s2d conv weight slab, row p = 2*ph + pw
    # b_ref: (1, 1)           f32   bias scalar in SMEM
    # o_ref: (TB, ho, wo)     f32   sigmoid(conv logits)
    #
    # 2x2 / stride-1 conv over the s2d representation == the original
    # 4x4 / stride-2 conv: 4 shifted MACs (VPU) + lane reduce (XLU), f32 acc.
    w = w_ref[...]
    acc = jnp.zeros(o_ref.shape, jnp.float32)
    for ph in range(2):
        for pw in range(2):
            xs = x_ref[:, ph:ph + ho, pw:pw + wo, :].astype(jnp.float32)
            wrow = w[2 * ph + pw:2 * ph + pw + 1, :]        # (1, CS) broadcast
            acc = acc + jnp.sum(xs * wrow, axis=-1)         # (TB, ho, wo)
    o_ref[...] = jax.nn.sigmoid(acc + b_ref[0, 0])


def d_get_logits_forward(h_code, weight, bias):
    """h_code: (B, C, H, W) f32 NCHW; weight: (1, C, 4, 4); bias: (1,).

    Returns (B, 1, H_out, W_out) f32 — sigmoid(conv4x4 stride2, valid).
    """
    B, C, H, W = h_code.shape
    assert H >= KH and W >= KW, "feature map smaller than the 4x4 conv kernel"
    Ho = (H - KH) // SH + 1
    Wo = (W - KW) // SW + 1
    Hh = _cdiv(H, 2)
    Wh = _cdiv(W, 2)
    CS = 4 * C   # s2d channel count (= 128 lanes for ndf = 4)

    # Single fused XLA pass over the input (bf16 cast + even-pad + s2d
    # transpose); no 4x im2col expansion.  s2d index d = rh*2C + rw*C + c.
    x = h_code.astype(jnp.bfloat16)
    x = jnp.pad(x, ((0, 0), (0, 0), (0, 2 * Hh - H), (0, 2 * Wh - W)))
    x = x.reshape(B, C, Hh, 2, Wh, 2)
    x = x.transpose(0, 2, 4, 3, 5, 1).reshape(B, Hh, Wh, CS)

    # Matching weight rearrangement (tiny; kept f32 for numerical parity):
    #   w_s2d[2*ph + pw, rh*2C + rw*C + c] = weight[0, c, 2*ph + rh, 2*pw + rw]
    w = weight[0].astype(jnp.float32).transpose(1, 2, 0)      # (KH, KW, C)
    w = w.reshape(2, 2, 2, 2, C).transpose(0, 2, 1, 3, 4)     # (ph, pw, rh, rw, c)
    w = w.reshape(4, CS)

    b_smem = bias.reshape(1, 1).astype(jnp.float32)

    # Batch tiling: keep grid >= 2 whenever B >= 2 (v7x dual TC) while the
    # double-buffered bf16 activation block stays comfortably inside VMEM.
    bytes_per_img = Hh * Wh * CS * 2
    tb_budget = max(1, (2 * 1024 * 1024) // bytes_per_img)
    TB = max(1, min(tb_budget, _cdiv(B, 2)))
    grid = (_cdiv(B, TB),)
    B_pad = grid[0] * TB
    if B_pad != B:
        x = jnp.pad(x, ((0, B_pad - B), (0, 0), (0, 0), (0, 0)))

    kernel = functools.partial(_conv_sigmoid_kernel, ho=Ho, wo=Wo)
    cost = pl.CostEstimate(
        flops=2 * B_pad * Ho * Wo * C * KH * KW,
        transcendentals=B_pad * Ho * Wo,
        bytes_accessed=x.size * 2 + w.size * 4 + B_pad * Ho * Wo * 4)

    out = pl.pallas_call(
        kernel,
        out_shape=jax.ShapeDtypeStruct((B_pad, Ho, Wo), jnp.float32),
        grid=grid,
        in_specs=[
            pl.BlockSpec((TB, Hh, Wh, CS), lambda i: (i, 0, 0, 0)),   # pipelined act tiles
            pl.BlockSpec((4, CS), lambda i: (0, 0)),                  # resident weight slab
            pl.BlockSpec(memory_space=pltpu.MemorySpace.SMEM),        # bias scalar
        ],
        out_specs=pl.BlockSpec((TB, Ho, Wo), lambda i: (i, 0, 0)),
        compiler_params=pltpu.CompilerParams(
            dimension_semantics=("parallel",),
            vmem_limit_bytes=32 * 1024 * 1024),
        cost_estimate=cost,
    )(x, w, b_smem)

    return out[:B, None, :, :]                                        # (B, 1, Ho, Wo)


if __name__ == "__main__":
    key = jax.random.PRNGKey(0)
    k_w, k_b, k_x1, k_x2, k_x3, k_x4 = jax.random.split(key, 6)

    C = NDF * 8                       # 32 conv in-channels
    fan_in = C * KH * KW
    bound = 1.0 / math.sqrt(fan_in)   # PyTorch Conv2d default init range
    weight = jax.random.uniform(k_w, (1, C, KH, KW), jnp.float32, -bound, bound)
    bias = jax.random.uniform(k_b, (1,), jnp.float32, -bound, bound)

    def reference(h, w, b):
        r = lax.conv_general_dilated(
            h, w, window_strides=(SH, SW), padding="VALID",
            dimension_numbers=("NCHW", "OIHW", "NCHW"),
            precision=lax.Precision.HIGHEST)
        return jax.nn.sigmoid(r + b.reshape(1, 1, 1, 1))

    # Module-default (4x4 feature map -> single logit), a medium map, an odd
    # size exercising the even-pad path, and a larger map.
    cases = [("default_4x4", (2, C, 4, 4), k_x1),
             ("medium_16x16", (2, C, 16, 16), k_x2),
             ("odd_17x17", (2, C, 17, 17), k_x3),
             ("large_36x36", (2, C, 36, 36), k_x4)]

    for name, shape, k in cases:
        h_code = jax.random.normal(k, shape, jnp.float32)
        out = jax.block_until_ready(d_get_logits_forward(h_code, weight, bias))

        B, _, H, W = shape
        Ho = (H - KH) // SH + 1
        Wo = (W - KW) // SW + 1
        assert out.shape == (B, 1, Ho, Wo), (name, out.shape)

        # Tight check: same bf16-rounded activations + f32 weights (validates
        # the kernel math; only accumulation-order differences remain).
        h_bf = h_code.astype(jnp.bfloat16).astype(jnp.float32)
        ref_bf = reference(h_bf, weight, bias)
        assert jnp.allclose(out, ref_bf, atol=1e-4, rtol=1e-4), name

        # Loose check against full-f32 module semantics (bf16 activation cast).
        ref_f32 = reference(h_code, weight, bias)
        assert jnp.allclose(out, ref_f32, atol=2e-2, rtol=2e-2), name

    print("KERNEL_OK")
</pallas_src>

<mosaic_0001>
module attributes {stable_mosaic.version = 11 : i64} {
  func.func @_conv_sigmoid_kernel(%arg0: i32, %arg1: memref<1x2x2x128xbf16, #tpu.memory_space<vmem>>, %arg2: memref<4x128xf32, #tpu.memory_space<vmem>>, %arg3: memref<1x1xf32, #tpu.memory_space<smem>>, %arg4: memref<1x1x1xf32, #tpu.memory_space<vmem>>) attributes {dimension_semantics = [#tpu.dimension_semantics<parallel>], iteration_bounds = array<i64: 2>, scalar_prefetch = 0 : i64, scratch_operands = 0 : i64, tpu.core_type = #tpu.core_type<tc>, window_params = [{transform_indices = @transform_0, window_bounds = array<i64: 1, 2, 2, 128>}, {pipeline_mode = #tpu.pipeline_mode<synchronous>, transform_indices = @transform_1, window_bounds = array<i64: 4, 128>}, {transform_indices = @transform_2, window_bounds = array<i64: 1, 1>}, {transform_indices = @transform_3, window_bounds = array<i64: 1, 1, 1>}]} {
    %c0 = arith.constant 0 : index
    %c0_0 = arith.constant 0 : index
    %0 = vector.load %arg2[%c0, %c0_0] : memref<4x128xf32, #tpu.memory_space<vmem>>, vector<4x128xf32>
    %cst = arith.constant 0.000000e+00 : f32
    %1 = vector.broadcast %cst : f32 to vector<1x1x1xf32>
    %c0_1 = arith.constant 0 : index
    %c0_2 = arith.constant 0 : index
    %c0_3 = arith.constant 0 : index
    %c0_4 = arith.constant 0 : index
    %2 = vector.load %arg1[%c0_1, %c0_2, %c0_3, %c0_4] : memref<1x2x2x128xbf16, #tpu.memory_space<vmem>>, vector<1x1x1x128xbf16>
    %3 = arith.extf %2 : vector<1x1x1x128xbf16> to vector<1x1x1x128xf32>
    %4 = vector.extract_strided_slice %0 {offsets = [0, 0], sizes = [1, 128], strides = [1, 1]} : vector<4x128xf32> to vector<1x128xf32>
    %5 = vector.shape_cast %4 : vector<1x128xf32> to vector<1x1x1x128xf32>
    %6 = arith.mulf %3, %5 : vector<1x1x1x128xf32>
    %cst_5 = arith.constant dense<0.000000e+00> : vector<1x1x1xf32>
    %7 = vector.multi_reduction <add>, %6, %cst_5 [3] : vector<1x1x1x128xf32> to vector<1x1x1xf32>
    %8 = arith.addf %1, %7 : vector<1x1x1xf32>
    %c0_6 = arith.constant 0 : index
    %c0_7 = arith.constant 0 : index
    %c1 = arith.constant 1 : index
    %c0_8 = arith.constant 0 : index
    %9 = vector.load %arg1[%c0_6, %c0_7, %c1, %c0_8] : memref<1x2x2x128xbf16, #tpu.memory_space<vmem>>, vector<1x1x1x128xbf16>
    %10 = arith.extf %9 : vector<1x1x1x128xbf16> to vector<1x1x1x128xf32>
    %11 = vector.extract_strided_slice %0 {offsets = [1, 0], sizes = [1, 128], strides = [1, 1]} : vector<4x128xf32> to vector<1x128xf32>
    %12 = vector.shape_cast %11 : vector<1x128xf32> to vector<1x1x1x128xf32>
    %13 = arith.mulf %10, %12 : vector<1x1x1x128xf32>
    %cst_9 = arith.constant dense<0.000000e+00> : vector<1x1x1xf32>
    %14 = vector.multi_reduction <add>, %13, %cst_9 [3] : vector<1x1x1x128xf32> to vector<1x1x1xf32>
    %15 = arith.addf %8, %14 : vector<1x1x1xf32>
    %c0_10 = arith.constant 0 : index
    %c1_11 = arith.constant 1 : index
    %c0_12 = arith.constant 0 : index
    %c0_13 = arith.constant 0 : index
    %16 = vector.load %arg1[%c0_10, %c1_11, %c0_12, %c0_13] : memref<1x2x2x128xbf16, #tpu.memory_space<vmem>>, vector<1x1x1x128xbf16>
    %17 = arith.extf %16 : vector<1x1x1x128xbf16> to vector<1x1x1x128xf32>
    %18 = vector.extract_strided_slice %0 {offsets = [2, 0], sizes = [1, 128], strides = [1, 1]} : vector<4x128xf32> to vector<1x128xf32>
    %19 = vector.shape_cast %18 : vector<1x128xf32> to vector<1x1x1x128xf32>
    %20 = arith.mulf %17, %19 : vector<1x1x1x128xf32>
    %cst_14 = arith.constant dense<0.000000e+00> : vector<1x1x1xf32>
    %21 = vector.multi_reduction <add>, %20, %cst_14 [3] : vector<1x1x1x128xf32> to vector<1x1x1xf32>
    %22 = arith.addf %15, %21 : vector<1x1x1xf32>
    %c0_15 = arith.constant 0 : index
    %c1_16 = arith.constant 1 : index
    %c1_17 = arith.constant 1 : index
    %c0_18 = arith.constant 0 : index
    %23 = vector.load %arg1[%c0_15, %c1_16, %c1_17, %c0_18] : memref<1x2x2x128xbf16, #tpu.memory_space<vmem>>, vector<1x1x1x128xbf16>
    %24 = arith.extf %23 : vector<1x1x1x128xbf16> to vector<1x1x1x128xf32>
    %25 = vector.extract_strided_slice %0 {offsets = [3, 0], sizes = [1, 128], strides = [1, 1]} : vector<4x128xf32> to vector<1x128xf32>
    %26 = vector.shape_cast %25 : vector<1x128xf32> to vector<1x1x1x128xf32>
    %27 = arith.mulf %24, %26 : vector<1x1x1x128xf32>
    %cst_19 = arith.constant dense<0.000000e+00> : vector<1x1x1xf32>
    %28 = vector.multi_reduction <add>, %27, %cst_19 [3] : vector<1x1x1x128xf32> to vector<1x1x1xf32>
    %29 = arith.addf %22, %28 : vector<1x1x1xf32>
    %c0_20 = arith.constant 0 : index
    %c0_21 = arith.constant 0 : index
    %30 = memref.load %arg3[%c0_20, %c0_21] : memref<1x1xf32, #tpu.memory_space<smem>>
    %31 = vector.broadcast %30 : f32 to vector<1x1x1xf32>
    %32 = arith.addf %29, %31 : vector<1x1x1xf32>
    %33 = arith.negf %32 : vector<1x1x1xf32>
    %34 = math.exp %33 : vector<1x1x1xf32>
    %cst_22 = arith.constant 1.000000e+00 : f32
    %35 = vector.broadcast %cst_22 : f32 to vector<1x1x1xf32>
    %36 = arith.addf %35, %34 : vector<1x1x1xf32>
    %37 = arith.divf %35, %36 : vector<1x1x1xf32>
    %c0_23 = arith.constant 0 : index
    %c0_24 = arith.constant 0 : index
    %c0_25 = arith.constant 0 : index
    %38 = vector.load %arg4[%c0_23, %c0_24, %c0_25] : memref<1x1x1xf32, #tpu.memory_space<vmem>>, vector<1x1x1xf32>
    tpu.vector_store %arg4[%c0_23, %c0_24, %c0_25], %37 {strides = array<i32>} : memref<1x1x1xf32, #tpu.memory_space<vmem>>, vector<1x1x1xf32>,
    return
  }
  func.func @transform_0(%arg0: i32) -> (i32, i32, i32, i32) {
    %c0_i32 = arith.constant 0 : i32
    %c0_i32_0 = arith.constant 0 : i32
    %c0_i32_1 = arith.constant 0 : i32
    %c0_i32_2 = arith.constant 0 : i32
    return %arg0, %c0_i32, %c0_i32_0, %c0_i32_1 : i32, i32, i32, i32
  }
  func.func @transform_1(%arg0: i32) -> (i32, i32) {
    %c0_i32 = arith.constant 0 : i32
    %c0_i32_0 = arith.constant 0 : i32
    %c0_i32_1 = arith.constant 0 : i32
    return %c0_i32, %c0_i32_0 : i32, i32
  }
  func.func @transform_2(%arg0: i32) -> (i32, i32) {
    %c0_i32 = arith.constant 0 : i32
    %c0_i32_0 = arith.constant 0 : i32
    %c0_i32_1 = arith.constant 0 : i32
    return %c0_i32, %c0_i32_0 : i32, i32
  }
  func.func @transform_3(%arg0: i32) -> (i32, i32, i32) {
    %c0_i32 = arith.constant 0 : i32
    %c0_i32_0 = arith.constant 0 : i32
    %c0_i32_1 = arith.constant 0 : i32
    return %arg0, %c0_i32, %c0_i32_0 : i32, i32, i32
  }
}

</mosaic_0001>

<llo_original>
// kernel: tpu_custom_call.1
$region0: #{tpu_custom_call.1}
  #allocation0 [shape = 'u32[]', space=smem, size = 0x4, offset = 0x4, fixed_abs, tag = 'smem constant byte address 0x4 - core index']
  #allocation1 [shape = 'u32[144,128]{1,0:T(1,128)}', space=vmem, size = 0x12000, scoped, tag = 'internal scratch']
  #allocation2 [shape = 'f32[1,1]{1,0:T(1,128)S(6)}', space=smem, size = 0x200, scoped, tag = 'scoped memory for tpu_custom_call.1']
  %s0 = inlined_call_operand.hbm [shape: bf16[2,2,2,128], index: 0, kind: input, shape index: {}]
  %s1 = inlined_call_operand.vmem [shape: f32[4,128], index: 1, kind: input, shape index: {}]
  %s2 = inlined_call_operand.<no memory space> [shape: f32[1,1], index: 2, kind: input, shape index: {}]
  %s3 = inlined_call_operand.vmem [shape: f32[2,1,1], index: 3, kind: output, shape index: {}]
  %s4 = sld [smem:[#allocation0]]
  $region49: #{tpu_custom_call.1} parent=0
    _
  %s6 = ssub.s32 1, %s4
  %s7 = scalar_select 0, %s6, %s4
  %8 = sst [smem:[#allocation2]] %s2
  $region1: #{tpu_custom_call.1} parent=0
    #allocation3 [shape = 'u8[2048]{0}', space=vmem, size = 0x800, scoped, tag = 'input window, operand 0']
    #allocation4 [shape = 's32[2]{0}', space=sflag, size = 0x8, scoped, tag = 'scoped memory for tpu_custom_call.1']
    %9 = vsyncpa [#allocation4], 0
    %s10 = scalar_lea.sflag [#allocation4], 1
    %11 = vsyncpa %s10, 0
    loop: start=0, step=1, limit=4
    $region2: #{tpu_custom_call.1} parent=1 // loop_pre_header
      _
    $region3: #{tpu_custom_call.1} parent=1 // loop_header
      %s13 = sphi 0, %s17
      %p14 = scmp.ge.s32.totalorder %s13, 4
      %s23 = sphi 0, %s25
      %s26 = sphi 0, %s23
      %s27 = sphi 0, %s26
      %s43 = sphi 0, %s27
      %s47 = sphi 0, %s47
      %s49 = sphi 0, %s47
      %s50 = sphi 0, %s49
      %s64 = sphi 0, %s50
      %s68 = sphi 0, %s68
      %s70 = sphi 0, %s68
      %s71 = sphi 0, %s70
      %s85 = sphi 0, %s71
      %s91 = sphi 0, %s93
      %s94 = sphi 0, %s91
      %s95 = sphi 0, %s94
      %s111 = sphi 0, %s95
    $region4: #{tpu_custom_call.1} parent=1 // loop_header_branch
      %16 = sbr.rel (%p14) target = $region8
    $region5: #{tpu_custom_call.1} parent=1 // loop_body
      %s18 = ssub.s32 %s13, 1
      %s19 = ssub.s32 %s13, 2
      %s20 = sadd.s32 %s13, 1
      %s21 = ssub.s32 %s13, %s20
      %p22 = scmp.eq.s32.totalorder %s21, 0
      %s24 = sadd.s32 %s23, 1
      %s25 = scalar_select %p22, %s23, %s24
      %p28 = pneg %p22
      %p29 = scmp.eq.s32.totalorder %s13, 1
      %p30 = por %p28, %p29
      %p31 = scmp.ne.s32.totalorder %s23, %s26
      %p32 = scmp.eq.s32.totalorder %s13, 0
      %p33 = por %p31, %p32
      %p34 = scmp.ne.s32.totalorder %s23, %s26
      %p35 = scmp.eq.s32.totalorder %s18, 1
      %p36 = por %p34, %p35
      %p37 = scmp.ne.s32.totalorder %s26, %s27
      %p38 = scmp.eq.s32.totalorder %s18, 0
      %p39 = por %p37, %p38
      %p40 = scmp.ne.s32.totalorder %s26, %s27
      %p41 = scmp.eq.s32.totalorder %s19, 1
      %p42 = por %p40, %p41
      %p44 = scmp.ne.s32.totalorder %s27, %s43
      %p45 = scmp.eq.s32.totalorder %s19, 0
      %p46 = por %p44, %p45
      %s48 = sadd.s32 %s47, 1
      %p51 = scmp.eq.s32.totalorder %s13, 1
      %p52 = scmp.ne.s32.totalorder %s47, %s49
      %p53 = scmp.eq.s32.totalorder %s13, 0
      %p54 = por %p52, %p53
      %p55 = scmp.ne.s32.totalorder %s47, %s49
      %p56 = scmp.eq.s32.totalorder %s18, 1
      %p57 = por %p55, %p56
      %p58 = scmp.ne.s32.totalorder %s49, %s50
      %p59 = scmp.eq.s32.totalorder %s18, 0
      %p60 = por %p58, %p59
      %p61 = scmp.ne.s32.totalorder %s49, %s50
      %p62 = scmp.eq.s32.totalorder %s19, 1
      %p63 = por %p61, %p62
      %p65 = scmp.ne.s32.totalorder %s50, %s64
      %p66 = scmp.eq.s32.totalorder %s19, 0
      %p67 = por %p65, %p66
      %s69 = sadd.s32 %s68, 1
      %p72 = scmp.eq.s32.totalorder %s13, 1
      %p73 = scmp.ne.s32.totalorder %s68, %s70
      %p74 = scmp.eq.s32.totalorder %s13, 0
      %p75 = por %p73, %p74
      %p76 = scmp.ne.s32.totalorder %s68, %s70
      %p77 = scmp.eq.s32.totalorder %s18, 1
      %p78 = por %p76, %p77
      %p79 = scmp.ne.s32.totalorder %s70, %s71
      %p80 = scmp.eq.s32.totalorder %s18, 0
      %p81 = por %p79, %p80
      %p82 = scmp.ne.s32.totalorder %s70, %s71
      %p83 = scmp.eq.s32.totalorder %s19, 1
      %p84 = por %p82, %p83
      %p86 = scmp.ne.s32.totalorder %s71, %s85
      %p87 = scmp.eq.s32.totalorder %s19, 0
      %p88 = por %p86, %p87
      %s89 = ssub.s32 %s13, %s20
      %p90 = scmp.eq.s32.totalorder %s89, 0
      %s92 = sadd.s32 %s91, 1
      %s93 = scalar_select %p90, %s91, %s92
      %p96 = pneg %p90
      %p97 = scmp.eq.s32.totalorder %s13, 1
      %p98 = por %p96, %p97
      %p99 = scmp.ne.s32.totalorder %s91, %s94
      %p100 = scmp.eq.s32.totalorder %s13, 0
      %p101 = por %p99, %p100
      %p102 = scmp.ne.s32.totalorder %s91, %s94
      %p103 = scmp.eq.s32.totalorder %s18, 1
      %p104 = por %p102, %p103
      %p105 = scmp.ne.s32.totalorder %s94, %s95
      %p106 = scmp.eq.s32.totalorder %s18, 0
      %p107 = por %p105, %p106
      %p108 = scmp.ne.s32.totalorder %s94, %s95
      %p109 = scmp.eq.s32.totalorder %s19, 1
      %p110 = por %p108, %p109
      %p112 = scmp.ne.s32.totalorder %s95, %s111
      %p113 = scmp.eq.s32.totalorder %s19, 0
      %p114 = por %p112, %p113
      %p115 = scmp.le.s32.totalorder 1, %s13
      %p116 = scmp.lt.s32.totalorder %s13, 3
      %p117 = pnand %p115, %p116
      %p118 = pneg %p117
      // Predicated region
      $region9: #{tpu_custom_call.1} parent=5 // pred_check
        _
      $region10: #{tpu_custom_call.1} parent=5 // pred_check_branch
        %120 = sbr.rel (%p117) target = $region12
      $region11: #{tpu_custom_call.1} parent=5 // pred_region
        %s121 = ssub.s32 %s13, 1
        // Predicated region
        $region13: #{tpu_custom_call.1} parent=11 // pred_check
          %p122 = pneg %p60
        $region14: #{tpu_custom_call.1} parent=11 // pred_check_branch
          %124 = sbr.rel (%p122) target = $region16
        $region15: #{tpu_custom_call.1} parent=11 // pred_region
          _
        $region16: #{tpu_custom_call.1} parent=11 // pred_fallthru
          _
        // Predicated region
        $region17: #{tpu_custom_call.1} parent=11 // pred_check
          %p125 = pneg %p81
        $region18: #{tpu_custom_call.1} parent=11 // pred_check_branch
          %127 = sbr.rel (%p125) target = $region20
        $region19: #{tpu_custom_call.1} parent=11 // pred_region
          _
        $region20: #{tpu_custom_call.1} parent=11 // pred_fallthru
          _
      $region12: #{tpu_custom_call.1} parent=5 // pred_fallthru
        _
      %p128 = scmp.lt.s32.totalorder %s13, 2
      // Predicated region
      $region21: #{tpu_custom_call.1} parent=5 // pred_check
        %p129 = pneg %p128
      $region22: #{tpu_custom_call.1} parent=5 // pred_check_branch
        %131 = sbr.rel (%p129) target = $region24
      $region23: #{tpu_custom_call.1} parent=5 // pred_region
        // Predicated region
        $region25: #{tpu_custom_call.1} parent=23 // pred_check
          %p132 = pneg %p33
        $region26: #{tpu_custom_call.1} parent=23 // pred_check_branch
          %134 = sbr.rel (%p132) target = $region28
        $region27: #{tpu_custom_call.1} parent=23 // pred_region
          %s135 = sand.u32 %s23, 1
          %s136 = scalar_lea.sflag [#allocation4], %s135
          %s137 = sand.u32 %s23, 1
          %s138 = smul.addr %s137, 2
          %s139 = scalar_lea.vmem [#allocation3], %s138
          %s141 = ssub.s32 32, 32
          %142 = vsyncadd %s136, %s141
          %s143 = smul.addr %s13, 2
          %s144 = smul.addr %s143, 16
          %s145 = scalar_lea.hbm %s0, %s144
          %s146 = sshll.u32 %s139, 4
          %s147 = int_to_ptr.vmem [resolvable:$true] %s146
          %152 = dma.hbm_to_vmem [thread:$0]  %s145, 32, %s147, %s136, 16, 16, 1
        $region28: #{tpu_custom_call.1} parent=23 // pred_fallthru
          _
      $region24: #{tpu_custom_call.1} parent=5 // pred_fallthru
        _
      %p153 = scmp.le.s32.totalorder 1, %s13
      %p154 = scmp.lt.s32.totalorder %s13, 3
      %p155 = pnand %p153, %p154
      %p156 = pneg %p155
      // Predicated region
      $region29: #{tpu_custom_call.1} parent=5 // pred_check
        _
      $region30: #{tpu_custom_call.1} parent=5 // pred_check_branch
        %158 = sbr.rel (%p155) target = $region32
      $region31: #{tpu_custom_call.1} parent=5 // pred_region
        %s159 = ssub.s32 %s13, 1
        %s160 = sand.u32 %s26, 1
        %s161 = scalar_lea.sflag [#allocation4], %s160
        %s162 = sand.u32 %s26, 1
        %s163 = smul.addr %s162, 2
        %s164 = scalar_lea.vmem [#allocation3], %s163
        // Predicated region
        $region33: #{tpu_custom_call.1} parent=31 // pred_check
          %p165 = pneg %p39
        $region34: #{tpu_custom_call.1} parent=31 // pred_check_branch
          %167 = sbr.rel (%p165) target = $region36
        $region35: #{tpu_custom_call.1} parent=31 // pred_region
          %168 = dma.done %s161, 32
        $region36: #{tpu_custom_call.1} parent=31 // pred_fallthru
          _
        %s169 = sand.u32 %s26, 1
        %s170 = scalar_lea.sflag [#allocation4], %s169
        %s171 = sand.u32 %s26, 1
        %s172 = smul.addr %s171, 2
        %s173 = scalar_lea.vmem [#allocation3], %s172
        %p174 = pneg %p39
        %p175 = pneg %p36
        %p176 = pneg %p60
        %p177 = pneg %p57
        %p178 = pneg %p81
        %p179 = pneg %p78
        %p180 = pneg %p107
        %p181 = pneg %p104
        %p182 = scmp.lt.s32.totalorder %s18, 1
        %s183 = scalar_select %p182, %s18, 1
        %s184 = scalar_lea.vmem %s3, %s183
        %p185 = scmp.lt.s32.totalorder %s18, 1
        %s186 = scalar_select %p185, %s18, 1
        %s187 = scalar_lea.vmem %s3, %s186
        %v188 = vld [vmem:[%s1] sm:$0xf]
        %v189 = vld [vmem:[%s164] sm:$0x1]
        %v190 = vunpack.c.l.bf16 %v189
        %v191 = vmul.f32 %v190, %v188
        %vm192 = vcmask 1040384
        %v193 = vsel %vm192, %v191, 0.0
        %194 = vadd.xlane.f32.xlu0 %v193
        %v195 = vpop.xlane.xlu0 %194
        %v196 = vadd.f32 %v195, 0.0
        %vm197 = vcmask 1041409
        %v198 = vsel %vm197, %v191, 0.0
        %199 = vadd.xlane.f32.xlu0 %v198
        %v200 = vpop.xlane.xlu0 %199
        %v202 = vrot.slane %v200, 1
        %v204 = vadd.f32 %v196, %v202
        %s205 = scalar_lea.vmem %s164, 1 [#allocation3]
        %v206 = vld [vmem:[%s205] sm:$0x1]
        %v207 = vunpack.c.l.bf16 %v206
        %v210 = vunpack.c.l.s4 1983009808
        %v211 = vunpack.c.0.s8 %v210
        %v212 = vlaneseq
        %v213 = vshrl.u32 %v212, 7
        %v214 = vsub.s32 %v211, %v213
        %v215 = vrot.slane %v188, %v214
        %v216 = vcombine.high %v215, %v215
        %v218 = vmul.f32 %v207, %v216
        %v219 = vsel %vm192, %v218, 0.0
        %220 = vadd.xlane.f32.xlu0 %v219
        %v221 = vpop.xlane.xlu0 %220
        %v222 = vadd.f32 %v204, %v221
        %v223 = vsel %vm197, %v218, 0.0
        %224 = vadd.xlane.f32.xlu0 %v223
        %v225 = vpop.xlane.xlu0 %224
        %v227 = vrot.slane %v225, 1
        %v229 = vadd.f32 %v222, %v227
        %s230 = sld [smem:[#allocation2]]
        %v231 = vstv %s230
        %v232 = vadd.f32 %v229, %v231
        %v233 = vxor.u32 %v232, 2147483648
        %v234 = vmul.f32 %v233, 1.442695
        %v235 = vpow.pop %v234
        %v236 = vadd.f32 %v235, 1.0
        %v237 = vrcp.pop %v236
        %v238 = vmul.f32 1.0, %v237
        %vm239 = vcmask 0
        %240 = vst.msk [vmem:[%s187] sm:$0x1] %vm239, %v238
        %p241 = scmp.lt.s32.totalorder %s18, 1
        %s242 = scalar_select %p241, %s18, 1
        %s243 = scalar_lea.vmem %s3, %s242
        // Predicated region
        $region37: #{tpu_custom_call.1} parent=31 // pred_check
          %p244 = pneg %p104
        $region38: #{tpu_custom_call.1} parent=31 // pred_check_branch
          %246 = sbr.rel (%p244) target = $region40
        $region39: #{tpu_custom_call.1} parent=31 // pred_region
          _
        $region40: #{tpu_custom_call.1} parent=31 // pred_fallthru
          _
      $region32: #{tpu_custom_call.1} parent=5 // pred_fallthru
        _
      %p247 = scmp.le.s32.totalorder 2, %s13
      // Predicated region
      $region41: #{tpu_custom_call.1} parent=5 // pred_check
        %p248 = pneg %p247
      $region42: #{tpu_custom_call.1} parent=5 // pred_check_branch
        %250 = sbr.rel (%p248) target = $region44
      $region43: #{tpu_custom_call.1} parent=5 // pred_region
        %s251 = ssub.s32 %s13, 2
        // Predicated region
        $region45: #{tpu_custom_call.1} parent=43 // pred_check
          %p252 = pneg %p110
        $region46: #{tpu_custom_call.1} parent=43 // pred_check_branch
          %254 = sbr.rel (%p252) target = $region48
        $region47: #{tpu_custom_call.1} parent=43 // pred_region
          %p255 = scmp.lt.s32.totalorder %s19, 1
          %s256 = scalar_select %p255, %s19, 1
          %s257 = scalar_lea.vmem %s3, %s256
        $region48: #{tpu_custom_call.1} parent=43 // pred_fallthru
          _
      $region44: #{tpu_custom_call.1} parent=5 // pred_fallthru
        _
    $region6: #{tpu_custom_call.1} parent=1 // loop_footer
      %s17 = sadd.s32 1, %s13
    $region7: #{tpu_custom_call.1} parent=1 // loop_footer_branch
      %12 = sbr.rel target = $region3
    $region8: #{tpu_custom_call.1} parent=1 // loop_exit
      _
    %258 = vsyncpa [#allocation4], 1
    %s259 = scalar_lea.sflag [#allocation4], 1
    %260 = vsyncpa %s259, 1

</llo_original>
